<compile_context>
chip_gen: v7x
topology: tpu7x:2x2x1
jax: 0.10.0
libtpu: 0.0.40
codegen_flags: <defaults>
</compile_context>

<pallas_src>
import jax
import jax.numpy as jnp
from jax.experimental import pallas as pl
from jax.experimental.pallas import tpu as pltpu


def _round_up(x, m):
    return ((x + m - 1) // m) * m


def _leaky_relu(x, slope=0.2):
    return jnp.where(x > 0, x, slope * x)


def _dense_vpu(w_ref, b_ref, x):
    """out[n, :] = sum_k w[n, k] * x[k, :] + b[n]   (pure VPU broadcast-FMA, no MXU).

    w_ref: [N, K] (PyTorch [out, in]);  b_ref: [N, 1];  x: [K, TM]  ->  [N, TM] f32
    """
    w = w_ref[...]
    n_out, k_in = w.shape
    tm = x.shape[1]
    # Bias broadcast hoisted once per layer (JAX does not CSE broadcast_in_dim).
    acc = jnp.broadcast_to(b_ref[...], (n_out, tm))
    for k in range(k_in):                     # K is 2 or 16: fully unrolled
        acc = acc + w[:, k:k + 1] * x[k:k + 1, :]
    return acc


def generator_kernel(x_ref, w1_ref, b1_ref, w2_ref, b2_ref, w3_ref, b3_ref, o_ref):
    x = x_ref[...].astype(jnp.float32)                    # [noise_dim, TM]
    h = _leaky_relu(_dense_vpu(w1_ref, b1_ref, x))        # [h0, TM]
    h = _leaky_relu(_dense_vpu(w2_ref, b2_ref, h))        # [h1, TM]
    o = _dense_vpu(w3_ref, b3_ref, h)                     # [out_dim, TM]
    o_ref[...] = o.astype(o_ref.dtype)


def generator_forward(noise, params, *, tm_max=8192):
    """noise: [B, noise_dim] f32 -> [B, out_dim] f32 (matches PyTorch Generator.forward)."""
    w1, b1, w2, b2, w3, b3 = (params["w1"], params["b1"], params["w2"],
                              params["b2"], params["w3"], params["b3"])
    B, noise_dim = noise.shape
    out_dim = w3.shape[0]

    # Lane-dense batch tile: multiple of 128, as large as practical (per-step grid
    # overhead ~0.35us; VMEM is never the constraint for 16-wide features).
    tm = min(tm_max, _round_up(B, 128))
    b_pad = _round_up(B, tm)

    x_t = jnp.transpose(noise)                            # [noise_dim, B]  (layout plumbing)
    if b_pad != B:
        x_t = jnp.pad(x_t, ((0, 0), (0, b_pad - B)))

    grid = (pl.cdiv(b_pad, tm),)

    out_t = pl.pallas_call(
        generator_kernel,
        out_shape=jax.ShapeDtypeStruct((out_dim, b_pad), noise.dtype),
        grid=grid,
        in_specs=[
            pl.BlockSpec((noise_dim, tm), lambda i: (0, i)),  # streamed x tile
            pl.BlockSpec(w1.shape, lambda i: (0, 0)),         # resident weights/biases
            pl.BlockSpec(b1.shape, lambda i: (0, 0)),
            pl.BlockSpec(w2.shape, lambda i: (0, 0)),
            pl.BlockSpec(b2.shape, lambda i: (0, 0)),
            pl.BlockSpec(w3.shape, lambda i: (0, 0)),
            pl.BlockSpec(b3.shape, lambda i: (0, 0)),
        ],
        out_specs=pl.BlockSpec((out_dim, tm), lambda i: (0, i)),
        compiler_params=pltpu.CompilerParams(
            dimension_semantics=("parallel",)),               # v7x: both TCs share batch
    )(x_t, w1, b1, w2, b2, w3, b3)

    return jnp.transpose(out_t[:, :B])                        # back to [B, out_dim]


def init_params(key, noise_dim=2, hidden_layer=(16, 16), output_dim=2,
                dtype=jnp.float32):
    """PyTorch-style uniform(+-1/sqrt(fan_in)); weights stored [out, in], biases [out, 1]."""
    dims = [(noise_dim, hidden_layer[0]),
            (hidden_layer[0], hidden_layer[1]),
            (hidden_layer[1], output_dim)]
    params = {}
    for i, (fan_in, fan_out) in enumerate(dims, start=1):
        key, kw, kb = jax.random.split(key, 3)
        bound = 1.0 / float(fan_in) ** 0.5
        params[f"w{i}"] = jax.random.uniform(kw, (fan_out, fan_in), dtype, -bound, bound)
        params[f"b{i}"] = jax.random.uniform(kb, (fan_out, 1), dtype, -bound, bound)
    return params


if __name__ == "__main__":
    key = jax.random.PRNGKey(0)
    k_params, k_noise = jax.random.split(key)

    noise_dim, hidden_layer, output_dim = 2, (16, 16), 2
    batch = 512                    # small demo; tm_max=256 -> 2 pipelined grid steps

    params = init_params(k_params, noise_dim, hidden_layer, output_dim)
    noise = jax.random.normal(k_noise, (batch, noise_dim), dtype=jnp.float32)

    out = generator_forward(noise, params, tm_max=256)
    jax.block_until_ready(out)

    # Pure-JAX reference of the same forward pass (PyTorch semantics: x @ W.T + b).
    def ref(x, p):
        dot = lambda a, b: jnp.matmul(a, b, precision=jax.lax.Precision.HIGHEST)
        h = dot(x, p["w1"].T) + p["b1"][:, 0]
        h = jnp.where(h > 0, h, 0.2 * h)
        h = dot(h, p["w2"].T) + p["b2"][:, 0]
        h = jnp.where(h > 0, h, 0.2 * h)
        return dot(h, p["w3"].T) + p["b3"][:, 0]

    expected = ref(noise, params)
    assert out.shape == (batch, output_dim)
    assert jnp.allclose(out, expected, atol=1e-4, rtol=1e-4), (
        float(jnp.max(jnp.abs(out - expected))))

    print("KERNEL_OK")
</pallas_src>

<mosaic_0001>
module attributes {stable_mosaic.version = 11 : i64} {
  func.func @generator_kernel(%arg0: i32, %arg1: memref<2x256xf32, #tpu.memory_space<vmem>>, %arg2: memref<16x2xf32, #tpu.memory_space<vmem>>, %arg3: memref<16x1xf32, #tpu.memory_space<vmem>>, %arg4: memref<16x16xf32, #tpu.memory_space<vmem>>, %arg5: memref<16x1xf32, #tpu.memory_space<vmem>>, %arg6: memref<2x16xf32, #tpu.memory_space<vmem>>, %arg7: memref<2x1xf32, #tpu.memory_space<vmem>>, %arg8: memref<2x256xf32, #tpu.memory_space<vmem>>) attributes {dimension_semantics = [#tpu.dimension_semantics<parallel>], iteration_bounds = array<i64: 2>, scalar_prefetch = 0 : i64, scratch_operands = 0 : i64, tpu.core_type = #tpu.core_type<tc>, window_params = [{transform_indices = @transform_0, window_bounds = array<i64: 2, 256>}, {pipeline_mode = #tpu.pipeline_mode<synchronous>, transform_indices = @transform_1, window_bounds = array<i64: 16, 2>}, {pipeline_mode = #tpu.pipeline_mode<synchronous>, transform_indices = @transform_2, window_bounds = array<i64: 16, 1>}, {pipeline_mode = #tpu.pipeline_mode<synchronous>, transform_indices = @transform_3, window_bounds = array<i64: 16, 16>}, {pipeline_mode = #tpu.pipeline_mode<synchronous>, transform_indices = @transform_4, window_bounds = array<i64: 16, 1>}, {pipeline_mode = #tpu.pipeline_mode<synchronous>, transform_indices = @transform_5, window_bounds = array<i64: 2, 16>}, {pipeline_mode = #tpu.pipeline_mode<synchronous>, transform_indices = @transform_6, window_bounds = array<i64: 2, 1>}, {transform_indices = @transform_7, window_bounds = array<i64: 2, 256>}]} {
    %c0 = arith.constant 0 : index
    %c0_0 = arith.constant 0 : index
    %0 = vector.load %arg1[%c0, %c0_0] : memref<2x256xf32, #tpu.memory_space<vmem>>, vector<2x256xf32>
    %c0_1 = arith.constant 0 : index
    %c0_2 = arith.constant 0 : index
    %1 = vector.load %arg2[%c0_1, %c0_2] : memref<16x2xf32, #tpu.memory_space<vmem>>, vector<16x2xf32>
    %c0_3 = arith.constant 0 : index
    %c0_4 = arith.constant 0 : index
    %2 = vector.load %arg3[%c0_3, %c0_4] : memref<16x1xf32, #tpu.memory_space<vmem>>, vector<16x1xf32>
    %3 = vector.shape_cast %2 : vector<16x1xf32> to vector<16x1xf32>
    %4 = vector.broadcast %3 : vector<16x1xf32> to vector<16x256xf32>
    %5 = vector.extract_strided_slice %1 {offsets = [0, 0], sizes = [16, 1], strides = [1, 1]} : vector<16x2xf32> to vector<16x1xf32>
    %6 = vector.extract_strided_slice %0 {offsets = [0, 0], sizes = [1, 256], strides = [1, 1]} : vector<2x256xf32> to vector<1x256xf32>
    %7 = vector.broadcast %5 : vector<16x1xf32> to vector<16x256xf32>
    %8 = vector.broadcast %6 : vector<1x256xf32> to vector<16x256xf32>
    %9 = arith.mulf %7, %8 : vector<16x256xf32>
    %10 = arith.addf %4, %9 : vector<16x256xf32>
    %11 = vector.extract_strided_slice %1 {offsets = [0, 1], sizes = [16, 1], strides = [1, 1]} : vector<16x2xf32> to vector<16x1xf32>
    %12 = vector.extract_strided_slice %0 {offsets = [1, 0], sizes = [1, 256], strides = [1, 1]} : vector<2x256xf32> to vector<1x256xf32>
    %13 = vector.broadcast %11 : vector<16x1xf32> to vector<16x256xf32>
    %14 = vector.broadcast %12 : vector<1x256xf32> to vector<16x256xf32>
    %15 = arith.mulf %13, %14 : vector<16x256xf32>
    %16 = arith.addf %10, %15 : vector<16x256xf32>
    %cst = arith.constant 0.000000e+00 : f32
    %17 = vector.broadcast %cst : f32 to vector<16x256xf32>
    %18 = arith.cmpf ogt, %16, %17 : vector<16x256xf32>
    %cst_5 = arith.constant 2.000000e-01 : f32
    %19 = vector.broadcast %cst_5 : f32 to vector<16x256xf32>
    %20 = arith.mulf %19, %16 : vector<16x256xf32>
    %21 = arith.select %18, %16, %20 : vector<16x256xi1>, vector<16x256xf32>
    %c0_6 = arith.constant 0 : index
    %c0_7 = arith.constant 0 : index
    %22 = vector.load %arg4[%c0_6, %c0_7] : memref<16x16xf32, #tpu.memory_space<vmem>>, vector<16x16xf32>
    %c0_8 = arith.constant 0 : index
    %c0_9 = arith.constant 0 : index
    %23 = vector.load %arg5[%c0_8, %c0_9] : memref<16x1xf32, #tpu.memory_space<vmem>>, vector<16x1xf32>
    %24 = vector.shape_cast %23 : vector<16x1xf32> to vector<16x1xf32>
    %25 = vector.broadcast %24 : vector<16x1xf32> to vector<16x256xf32>
    %26 = vector.extract_strided_slice %22 {offsets = [0, 0], sizes = [16, 1], strides = [1, 1]} : vector<16x16xf32> to vector<16x1xf32>
    %27 = vector.extract_strided_slice %21 {offsets = [0, 0], sizes = [1, 256], strides = [1, 1]} : vector<16x256xf32> to vector<1x256xf32>
    %28 = vector.broadcast %26 : vector<16x1xf32> to vector<16x256xf32>
    %29 = vector.broadcast %27 : vector<1x256xf32> to vector<16x256xf32>
    %30 = arith.mulf %28, %29 : vector<16x256xf32>
    %31 = arith.addf %25, %30 : vector<16x256xf32>
    %32 = vector.extract_strided_slice %22 {offsets = [0, 1], sizes = [16, 1], strides = [1, 1]} : vector<16x16xf32> to vector<16x1xf32>
    %33 = vector.extract_strided_slice %21 {offsets = [1, 0], sizes = [1, 256], strides = [1, 1]} : vector<16x256xf32> to vector<1x256xf32>
    %34 = vector.broadcast %32 : vector<16x1xf32> to vector<16x256xf32>
    %35 = vector.broadcast %33 : vector<1x256xf32> to vector<16x256xf32>
    %36 = arith.mulf %34, %35 : vector<16x256xf32>
    %37 = arith.addf %31, %36 : vector<16x256xf32>
    %38 = vector.extract_strided_slice %22 {offsets = [0, 2], sizes = [16, 1], strides = [1, 1]} : vector<16x16xf32> to vector<16x1xf32>
    %39 = vector.extract_strided_slice %21 {offsets = [2, 0], sizes = [1, 256], strides = [1, 1]} : vector<16x256xf32> to vector<1x256xf32>
    %40 = vector.broadcast %38 : vector<16x1xf32> to vector<16x256xf32>
    %41 = vector.broadcast %39 : vector<1x256xf32> to vector<16x256xf32>
    %42 = arith.mulf %40, %41 : vector<16x256xf32>
    %43 = arith.addf %37, %42 : vector<16x256xf32>
    %44 = vector.extract_strided_slice %22 {offsets = [0, 3], sizes = [16, 1], strides = [1, 1]} : vector<16x16xf32> to vector<16x1xf32>
    %45 = vector.extract_strided_slice %21 {offsets = [3, 0], sizes = [1, 256], strides = [1, 1]} : vector<16x256xf32> to vector<1x256xf32>
    %46 = vector.broadcast %44 : vector<16x1xf32> to vector<16x256xf32>
    %47 = vector.broadcast %45 : vector<1x256xf32> to vector<16x256xf32>
    %48 = arith.mulf %46, %47 : vector<16x256xf32>
    %49 = arith.addf %43, %48 : vector<16x256xf32>
    %50 = vector.extract_strided_slice %22 {offsets = [0, 4], sizes = [16, 1], strides = [1, 1]} : vector<16x16xf32> to vector<16x1xf32>
    %51 = vector.extract_strided_slice %21 {offsets = [4, 0], sizes = [1, 256], strides = [1, 1]} : vector<16x256xf32> to vector<1x256xf32>
    %52 = vector.broadcast %50 : vector<16x1xf32> to vector<16x256xf32>
    %53 = vector.broadcast %51 : vector<1x256xf32> to vector<16x256xf32>
    %54 = arith.mulf %52, %53 : vector<16x256xf32>
    %55 = arith.addf %49, %54 : vector<16x256xf32>
    %56 = vector.extract_strided_slice %22 {offsets = [0, 5], sizes = [16, 1], strides = [1, 1]} : vector<16x16xf32> to vector<16x1xf32>
    %57 = vector.extract_strided_slice %21 {offsets = [5, 0], sizes = [1, 256], strides = [1, 1]} : vector<16x256xf32> to vector<1x256xf32>
    %58 = vector.broadcast %56 : vector<16x1xf32> to vector<16x256xf32>
    %59 = vector.broadcast %57 : vector<1x256xf32> to vector<16x256xf32>
    %60 = arith.mulf %58, %59 : vector<16x256xf32>
    %61 = arith.addf %55, %60 : vector<16x256xf32>
    %62 = vector.extract_strided_slice %22 {offsets = [0, 6], sizes = [16, 1], strides = [1, 1]} : vector<16x16xf32> to vector<16x1xf32>
    %63 = vector.extract_strided_slice %21 {offsets = [6, 0], sizes = [1, 256], strides = [1, 1]} : vector<16x256xf32> to vector<1x256xf32>
    %64 = vector.broadcast %62 : vector<16x1xf32> to vector<16x256xf32>
    %65 = vector.broadcast %63 : vector<1x256xf32> to vector<16x256xf32>
    %66 = arith.mulf %64, %65 : vector<16x256xf32>
    %67 = arith.addf %61, %66 : vector<16x256xf32>
    %68 = vector.extract_strided_slice %22 {offsets = [0, 7], sizes = [16, 1], strides = [1, 1]} : vector<16x16xf32> to vector<16x1xf32>
    %69 = vector.extract_strided_slice %21 {offsets = [7, 0], sizes = [1, 256], strides = [1, 1]} : vector<16x256xf32> to vector<1x256xf32>
    %70 = vector.broadcast %68 : vector<16x1xf32> to vector<16x256xf32>
    %71 = vector.broadcast %69 : vector<1x256xf32> to vector<16x256xf32>
    %72 = arith.mulf %70, %71 : vector<16x256xf32>
    %73 = arith.addf %67, %72 : vector<16x256xf32>
    %74 = vector.extract_strided_slice %22 {offsets = [0, 8], sizes = [16, 1], strides = [1, 1]} : vector<16x16xf32> to vector<16x1xf32>
    %75 = vector.extract_strided_slice %21 {offsets = [8, 0], sizes = [1, 256], strides = [1, 1]} : vector<16x256xf32> to vector<1x256xf32>
    %76 = vector.broadcast %74 : vector<16x1xf32> to vector<16x256xf32>
    %77 = vector.broadcast %75 : vector<1x256xf32> to vector<16x256xf32>
    %78 = arith.mulf %76, %77 : vector<16x256xf32>
    %79 = arith.addf %73, %78 : vector<16x256xf32>
    %80 = vector.extract_strided_slice %22 {offsets = [0, 9], sizes = [16, 1], strides = [1, 1]} : vector<16x16xf32> to vector<16x1xf32>
    %81 = vector.extract_strided_slice %21 {offsets = [9, 0], sizes = [1, 256], strides = [1, 1]} : vector<16x256xf32> to vector<1x256xf32>
    %82 = vector.broadcast %80 : vector<16x1xf32> to vector<16x256xf32>
    %83 = vector.broadcast %81 : vector<1x256xf32> to vector<16x256xf32>
    %84 = arith.mulf %82, %83 : vector<16x256xf32>
    %85 = arith.addf %79, %84 : vector<16x256xf32>
    %86 = vector.extract_strided_slice %22 {offsets = [0, 10], sizes = [16, 1], strides = [1, 1]} : vector<16x16xf32> to vector<16x1xf32>
    %87 = vector.extract_strided_slice %21 {offsets = [10, 0], sizes = [1, 256], strides = [1, 1]} : vector<16x256xf32> to vector<1x256xf32>
    %88 = vector.broadcast %86 : vector<16x1xf32> to vector<16x256xf32>
    %89 = vector.broadcast %87 : vector<1x256xf32> to vector<16x256xf32>
    %90 = arith.mulf %88, %89 : vector<16x256xf32>
    %91 = arith.addf %85, %90 : vector<16x256xf32>
    %92 = vector.extract_strided_slice %22 {offsets = [0, 11], sizes = [16, 1], strides = [1, 1]} : vector<16x16xf32> to vector<16x1xf32>
    %93 = vector.extract_strided_slice %21 {offsets = [11, 0], sizes = [1, 256], strides = [1, 1]} : vector<16x256xf32> to vector<1x256xf32>
    %94 = vector.broadcast %92 : vector<16x1xf32> to vector<16x256xf32>
    %95 = vector.broadcast %93 : vector<1x256xf32> to vector<16x256xf32>
    %96 = arith.mulf %94, %95 : vector<16x256xf32>
    %97 = arith.addf %91, %96 : vector<16x256xf32>
    %98 = vector.extract_strided_slice %22 {offsets = [0, 12], sizes = [16, 1], strides = [1, 1]} : vector<16x16xf32> to vector<16x1xf32>
    %99 = vector.extract_strided_slice %21 {offsets = [12, 0], sizes = [1, 256], strides = [1, 1]} : vector<16x256xf32> to vector<1x256xf32>
    %100 = vector.broadcast %98 : vector<16x1xf32> to vector<16x256xf32>
    %101 = vector.broadcast %99 : vector<1x256xf32> to vector<16x256xf32>
    %102 = arith.mulf %100, %101 : vector<16x256xf32>
    %103 = arith.addf %97, %102 : vector<16x256xf32>
    %104 = vector.extract_strided_slice %22 {offsets = [0, 13], sizes = [16, 1], strides = [1, 1]} : vector<16x16xf32> to vector<16x1xf32>
    %105 = vector.extract_strided_slice %21 {offsets = [13, 0], sizes = [1, 256], strides = [1, 1]} : vector<16x256xf32> to vector<1x256xf32>
    %106 = vector.broadcast %104 : vector<16x1xf32> to vector<16x256xf32>
    %107 = vector.broadcast %105 : vector<1x256xf32> to vector<16x256xf32>
    %108 = arith.mulf %106, %107 : vector<16x256xf32>
    %109 = arith.addf %103, %108 : vector<16x256xf32>
    %110 = vector.extract_strided_slice %22 {offsets = [0, 14], sizes = [16, 1], strides = [1, 1]} : vector<16x16xf32> to vector<16x1xf32>
    %111 = vector.extract_strided_slice %21 {offsets = [14, 0], sizes = [1, 256], strides = [1, 1]} : vector<16x256xf32> to vector<1x256xf32>
    %112 = vector.broadcast %110 : vector<16x1xf32> to vector<16x256xf32>
    %113 = vector.broadcast %111 : vector<1x256xf32> to vector<16x256xf32>
    %114 = arith.mulf %112, %113 : vector<16x256xf32>
    %115 = arith.addf %109, %114 : vector<16x256xf32>
    %116 = vector.extract_strided_slice %22 {offsets = [0, 15], sizes = [16, 1], strides = [1, 1]} : vector<16x16xf32> to vector<16x1xf32>
    %117 = vector.extract_strided_slice %21 {offsets = [15, 0], sizes = [1, 256], strides = [1, 1]} : vector<16x256xf32> to vector<1x256xf32>
    %118 = vector.broadcast %116 : vector<16x1xf32> to vector<16x256xf32>
    %119 = vector.broadcast %117 : vector<1x256xf32> to vector<16x256xf32>
    %120 = arith.mulf %118, %119 : vector<16x256xf32>
    %121 = arith.addf %115, %120 : vector<16x256xf32>
    %cst_10 = arith.constant 0.000000e+00 : f32
    %122 = vector.broadcast %cst_10 : f32 to vector<16x256xf32>
    %123 = arith.cmpf ogt, %121, %122 : vector<16x256xf32>
    %cst_11 = arith.constant 2.000000e-01 : f32
    %124 = vector.broadcast %cst_11 : f32 to vector<16x256xf32>
    %125 = arith.mulf %124, %121 : vector<16x256xf32>
    %126 = arith.select %123, %121, %125 : vector<16x256xi1>, vector<16x256xf32>
    %c0_12 = arith.constant 0 : index
    %c0_13 = arith.constant 0 : index
    %127 = vector.load %arg6[%c0_12, %c0_13] : memref<2x16xf32, #tpu.memory_space<vmem>>, vector<2x16xf32>
    %c0_14 = arith.constant 0 : index
    %c0_15 = arith.constant 0 : index
    %128 = vector.load %arg7[%c0_14, %c0_15] : memref<2x1xf32, #tpu.memory_space<vmem>>, vector<2x1xf32>
    %129 = vector.shape_cast %128 : vector<2x1xf32> to vector<2x1xf32>
    %130 = vector.broadcast %129 : vector<2x1xf32> to vector<2x256xf32>
    %131 = vector.extract_strided_slice %127 {offsets = [0, 0], sizes = [2, 1], strides = [1, 1]} : vector<2x16xf32> to vector<2x1xf32>
    %132 = vector.extract_strided_slice %126 {offsets = [0, 0], sizes = [1, 256], strides = [1, 1]} : vector<16x256xf32> to vector<1x256xf32>
    %133 = vector.broadcast %131 : vector<2x1xf32> to vector<2x256xf32>
    %134 = vector.broadcast %132 : vector<1x256xf32> to vector<2x256xf32>
    %135 = arith.mulf %133, %134 : vector<2x256xf32>
    %136 = arith.addf %130, %135 : vector<2x256xf32>
    %137 = vector.extract_strided_slice %127 {offsets = [0, 1], sizes = [2, 1], strides = [1, 1]} : vector<2x16xf32> to vector<2x1xf32>
    %138 = vector.extract_strided_slice %126 {offsets = [1, 0], sizes = [1, 256], strides = [1, 1]} : vector<16x256xf32> to vector<1x256xf32>
    %139 = vector.broadcast %137 : vector<2x1xf32> to vector<2x256xf32>
    %140 = vector.broadcast %138 : vector<1x256xf32> to vector<2x256xf32>
    %141 = arith.mulf %139, %140 : vector<2x256xf32>
    %142 = arith.addf %136, %141 : vector<2x256xf32>
    %143 = vector.extract_strided_slice %127 {offsets = [0, 2], sizes = [2, 1], strides = [1, 1]} : vector<2x16xf32> to vector<2x1xf32>
    %144 = vector.extract_strided_slice %126 {offsets = [2, 0], sizes = [1, 256], strides = [1, 1]} : vector<16x256xf32> to vector<1x256xf32>
    %145 = vector.broadcast %143 : vector<2x1xf32> to vector<2x256xf32>
    %146 = vector.broadcast %144 : vector<1x256xf32> to vector<2x256xf32>
    %147 = arith.mulf %145, %146 : vector<2x256xf32>
    %148 = arith.addf %142, %147 : vector<2x256xf32>
    %149 = vector.extract_strided_slice %127 {offsets = [0, 3], sizes = [2, 1], strides = [1, 1]} : vector<2x16xf32> to vector<2x1xf32>
    %150 = vector.extract_strided_slice %126 {offsets = [3, 0], sizes = [1, 256], strides = [1, 1]} : vector<16x256xf32> to vector<1x256xf32>
    %151 = vector.broadcast %149 : vector<2x1xf32> to vector<2x256xf32>
    %152 = vector.broadcast %150 : vector<1x256xf32> to vector<2x256xf32>
    %153 = arith.mulf %151, %152 : vector<2x256xf32>
    %154 = arith.addf %148, %153 : vector<2x256xf32>
    %155 = vector.extract_strided_slice %127 {offsets = [0, 4], sizes = [2, 1], strides = [1, 1]} : vector<2x16xf32> to vector<2x1xf32>
    %156 = vector.extract_strided_slice %126 {offsets = [4, 0], sizes = [1, 256], strides = [1, 1]} : vector<16x256xf32> to vector<1x256xf32>
    %157 = vector.broadcast %155 : vector<2x1xf32> to vector<2x256xf32>
    %158 = vector.broadcast %156 : vector<1x256xf32> to vector<2x256xf32>
    %159 = arith.mulf %157, %158 : vector<2x256xf32>
    %160 = arith.addf %154, %159 : vector<2x256xf32>
    %161 = vector.extract_strided_slice %127 {offsets = [0, 5], sizes = [2, 1], strides = [1, 1]} : vector<2x16xf32> to vector<2x1xf32>
    %162 = vector.extract_strided_slice %126 {offsets = [5, 0], sizes = [1, 256], strides = [1, 1]} : vector<16x256xf32> to vector<1x256xf32>
    %163 = vector.broadcast %161 : vector<2x1xf32> to vector<2x256xf32>
    %164 = vector.broadcast %162 : vector<1x256xf32> to vector<2x256xf32>
    %165 = arith.mulf %163, %164 : vector<2x256xf32>
    %166 = arith.addf %160, %165 : vector<2x256xf32>
    %167 = vector.extract_strided_slice %127 {offsets = [0, 6], sizes = [2, 1], strides = [1, 1]} : vector<2x16xf32> to vector<2x1xf32>
    %168 = vector.extract_strided_slice %126 {offsets = [6, 0], sizes = [1, 256], strides = [1, 1]} : vector<16x256xf32> to vector<1x256xf32>
    %169 = vector.broadcast %167 : vector<2x1xf32> to vector<2x256xf32>
    %170 = vector.broadcast %168 : vector<1x256xf32> to vector<2x256xf32>
    %171 = arith.mulf %169, %170 : vector<2x256xf32>
    %172 = arith.addf %166, %171 : vector<2x256xf32>
    %173 = vector.extract_strided_slice %127 {offsets = [0, 7], sizes = [2, 1], strides = [1, 1]} : vector<2x16xf32> to vector<2x1xf32>
    %174 = vector.extract_strided_slice %126 {offsets = [7, 0], sizes = [1, 256], strides = [1, 1]} : vector<16x256xf32> to vector<1x256xf32>
    %175 = vector.broadcast %173 : vector<2x1xf32> to vector<2x256xf32>
    %176 = vector.broadcast %174 : vector<1x256xf32> to vector<2x256xf32>
    %177 = arith.mulf %175, %176 : vector<2x256xf32>
    %178 = arith.addf %172, %177 : vector<2x256xf32>
    %179 = vector.extract_strided_slice %127 {offsets = [0, 8], sizes = [2, 1], strides = [1, 1]} : vector<2x16xf32> to vector<2x1xf32>
    %180 = vector.extract_strided_slice %126 {offsets = [8, 0], sizes = [1, 256], strides = [1, 1]} : vector<16x256xf32> to vector<1x256xf32>
    %181 = vector.broadcast %179 : vector<2x1xf32> to vector<2x256xf32>
    %182 = vector.broadcast %180 : vector<1x256xf32> to vector<2x256xf32>
    %183 = arith.mulf %181, %182 : vector<2x256xf32>
    %184 = arith.addf %178, %183 : vector<2x256xf32>
    %185 = vector.extract_strided_slice %127 {offsets = [0, 9], sizes = [2, 1], strides = [1, 1]} : vector<2x16xf32> to vector<2x1xf32>
    %186 = vector.extract_strided_slice %126 {offsets = [9, 0], sizes = [1, 256], strides = [1, 1]} : vector<16x256xf32> to vector<1x256xf32>
    %187 = vector.broadcast %185 : vector<2x1xf32> to vector<2x256xf32>
    %188 = vector.broadcast %186 : vector<1x256xf32> to vector<2x256xf32>
    %189 = arith.mulf %187, %188 : vector<2x256xf32>
    %190 = arith.addf %184, %189 : vector<2x256xf32>
    %191 = vector.extract_strided_slice %127 {offsets = [0, 10], sizes = [2, 1], strides = [1, 1]} : vector<2x16xf32> to vector<2x1xf32>
    %192 = vector.extract_strided_slice %126 {offsets = [10, 0], sizes = [1, 256], strides = [1, 1]} : vector<16x256xf32> to vector<1x256xf32>
    %193 = vector.broadcast %191 : vector<2x1xf32> to vector<2x256xf32>
    %194 = vector.broadcast %192 : vector<1x256xf32> to vector<2x256xf32>
    %195 = arith.mulf %193, %194 : vector<2x256xf32>
    %196 = arith.addf %190, %195 : vector<2x256xf32>
    %197 = vector.extract_strided_slice %127 {offsets = [0, 11], sizes = [2, 1], strides = [1, 1]} : vector<2x16xf32> to vector<2x1xf32>
    %198 = vector.extract_strided_slice %126 {offsets = [11, 0], sizes = [1, 256], strides = [1, 1]} : vector<16x256xf32> to vector<1x256xf32>
    %199 = vector.broadcast %197 : vector<2x1xf32> to vector<2x256xf32>
    %200 = vector.broadcast %198 : vector<1x256xf32> to vector<2x256xf32>
    %201 = arith.mulf %199, %200 : vector<2x256xf32>
    %202 = arith.addf %196, %201 : vector<2x256xf32>
    %203 = vector.extract_strided_slice %127 {offsets = [0, 12], sizes = [2, 1], strides = [1, 1]} : vector<2x16xf32> to vector<2x1xf32>
    %204 = vector.extract_strided_slice %126 {offsets = [12, 0], sizes = [1, 256], strides = [1, 1]} : vector<16x256xf32> to vector<1x256xf32>
    %205 = vector.broadcast %203 : vector<2x1xf32> to vector<2x256xf32>
    %206 = vector.broadcast %204 : vector<1x256xf32> to vector<2x256xf32>
    %207 = arith.mulf %205, %206 : vector<2x256xf32>
    %208 = arith.addf %202, %207 : vector<2x256xf32>
    %209 = vector.extract_strided_slice %127 {offsets = [0, 13], sizes = [2, 1], strides = [1, 1]} : vector<2x16xf32> to vector<2x1xf32>
    %210 = vector.extract_strided_slice %126 {offsets = [13, 0], sizes = [1, 256], strides = [1, 1]} : vector<16x256xf32> to vector<1x256xf32>
    %211 = vector.broadcast %209 : vector<2x1xf32> to vector<2x256xf32>
    %212 = vector.broadcast %210 : vector<1x256xf32> to vector<2x256xf32>
    %213 = arith.mulf %211, %212 : vector<2x256xf32>
    %214 = arith.addf %208, %213 : vector<2x256xf32>
    %215 = vector.extract_strided_slice %127 {offsets = [0, 14], sizes = [2, 1], strides = [1, 1]} : vector<2x16xf32> to vector<2x1xf32>
    %216 = vector.extract_strided_slice %126 {offsets = [14, 0], sizes = [1, 256], strides = [1, 1]} : vector<16x256xf32> to vector<1x256xf32>
    %217 = vector.broadcast %215 : vector<2x1xf32> to vector<2x256xf32>
    %218 = vector.broadcast %216 : vector<1x256xf32> to vector<2x256xf32>
    %219 = arith.mulf %217, %218 : vector<2x256xf32>
    %220 = arith.addf %214, %219 : vector<2x256xf32>
    %221 = vector.extract_strided_slice %127 {offsets = [0, 15], sizes = [2, 1], strides = [1, 1]} : vector<2x16xf32> to vector<2x1xf32>
    %222 = vector.extract_strided_slice %126 {offsets = [15, 0], sizes = [1, 256], strides = [1, 1]} : vector<16x256xf32> to vector<1x256xf32>
    %223 = vector.broadcast %221 : vector<2x1xf32> to vector<2x256xf32>
    %224 = vector.broadcast %222 : vector<1x256xf32> to vector<2x256xf32>
    %225 = arith.mulf %223, %224 : vector<2x256xf32>
    %226 = arith.addf %220, %225 : vector<2x256xf32>
    %c0_16 = arith.constant 0 : index
    %c0_17 = arith.constant 0 : index
    %227 = vector.load %arg8[%c0_16, %c0_17] : memref<2x256xf32, #tpu.memory_space<vmem>>, vector<2x256xf32>
    tpu.vector_store %arg8[%c0_16, %c0_17], %226 {strides = array<i32>} : memref<2x256xf32, #tpu.memory_space<vmem>>, vector<2x256xf32>,
    return
  }
  func.func @transform_0(%arg0: i32) -> (i32, i32) {
    %c0_i32 = arith.constant 0 : i32
    %c0_i32_0 = arith.constant 0 : i32
    return %c0_i32, %arg0 : i32, i32
  }
  func.func @transform_1(%arg0: i32) -> (i32, i32) {
    %c0_i32 = arith.constant 0 : i32
    %c0_i32_0 = arith.constant 0 : i32
    %c0_i32_1 = arith.constant 0 : i32
    return %c0_i32, %c0_i32_0 : i32, i32
  }
  func.func @transform_2(%arg0: i32) -> (i32, i32) {
    %c0_i32 = arith.constant 0 : i32
    %c0_i32_0 = arith.constant 0 : i32
    %c0_i32_1 = arith.constant 0 : i32
    return %c0_i32, %c0_i32_0 : i32, i32
  }
  func.func @transform_3(%arg0: i32) -> (i32, i32) {
    %c0_i32 = arith.constant 0 : i32
    %c0_i32_0 = arith.constant 0 : i32
    %c0_i32_1 = arith.constant 0 : i32
    return %c0_i32, %c0_i32_0 : i32, i32
  }
  func.func @transform_4(%arg0: i32) -> (i32, i32) {
    %c0_i32 = arith.constant 0 : i32
    %c0_i32_0 = arith.constant 0 : i32
    %c0_i32_1 = arith.constant 0 : i32
    return %c0_i32, %c0_i32_0 : i32, i32
  }
  func.func @transform_5(%arg0: i32) -> (i32, i32) {
    %c0_i32 = arith.constant 0 : i32
    %c0_i32_0 = arith.constant 0 : i32
    %c0_i32_1 = arith.constant 0 : i32
    return %c0_i32, %c0_i32_0 : i32, i32
  }
  func.func @transform_6(%arg0: i32) -> (i32, i32) {
    %c0_i32 = arith.constant 0 : i32
    %c0_i32_0 = arith.constant 0 : i32
    %c0_i32_1 = arith.constant 0 : i32
    return %c0_i32, %c0_i32_0 : i32, i32
  }
  func.func @transform_7(%arg0: i32) -> (i32, i32) {
    %c0_i32 = arith.constant 0 : i32
    %c0_i32_0 = arith.constant 0 : i32
    return %c0_i32, %arg0 : i32, i32
  }
}

</mosaic_0001>

<llo_original>
// kernel: tpu_custom_call.1
$region0: #{tpu_custom_call.1}
  #allocation0 [shape = 'u32[]', space=smem, size = 0x4, offset = 0x4, fixed_abs, tag = 'smem constant byte address 0x4 - core index']
  #allocation1 [shape = 'u32[144,128]{1,0:T(1,128)}', space=vmem, size = 0x12000, scoped, tag = 'internal scratch']
  %s0 = inlined_call_operand.vmem [shape: f32[2,512], index: 0, kind: input, shape index: {}]
  %s1 = inlined_call_operand.vmem [shape: f32[16,2], index: 1, kind: input, shape index: {}]
  %s2 = inlined_call_operand.vmem [shape: f32[16,1], index: 2, kind: input, shape index: {}]
  %s3 = inlined_call_operand.vmem [shape: f32[16,16], index: 3, kind: input, shape index: {}]
  %s4 = inlined_call_operand.vmem [shape: f32[16,1], index: 4, kind: input, shape index: {}]
  %s5 = inlined_call_operand.vmem [shape: f32[2,16], index: 5, kind: input, shape index: {}]
  %s6 = inlined_call_operand.vmem [shape: f32[2,1], index: 6, kind: input, shape index: {}]
  %s7 = inlined_call_operand.hbm [shape: f32[2,512], index: 7, kind: output, shape index: {}]
  %s8 = sld [smem:[#allocation0]]
  $region61: #{tpu_custom_call.1} parent=0
    _
  %s10 = ssub.s32 1, %s8
  %s11 = scalar_select 0, %s10, %s8
  $region1: #{tpu_custom_call.1} parent=0
    #allocation2 [shape = 'u8[4096]{0}', space=vmem, size = 0x1000, scoped, tag = 'output window, operand 0']
    #allocation3 [shape = 's32[2]{0}', space=sflag, size = 0x8, scoped, tag = 'scoped memory for tpu_custom_call.1']
    %12 = vsyncpa [#allocation3], 0
    %s13 = scalar_lea.sflag [#allocation3], 1
    %14 = vsyncpa %s13, 0
    loop: start=0, step=1, limit=4
    $region2: #{tpu_custom_call.1} parent=1 // loop_pre_header
      _
    $region3: #{tpu_custom_call.1} parent=1 // loop_header
      %s16 = sphi 0, %s20
      %p17 = scmp.ge.s32.totalorder %s16, 4
      %s26 = sphi 0, %s28
      %s29 = sphi 0, %s26
      %s30 = sphi 0, %s29
      %s46 = sphi 0, %s30
      %s50 = sphi 0, %s50
      %s52 = sphi 0, %s50
      %s53 = sphi 0, %s52
      %s67 = sphi 0, %s53
      %s71 = sphi 0, %s71
      %s73 = sphi 0, %s71
      %s74 = sphi 0, %s73
      %s88 = sphi 0, %s74
      %s92 = sphi 0, %s92
      %s94 = sphi 0, %s92
      %s95 = sphi 0, %s94
      %s109 = sphi 0, %s95
      %s113 = sphi 0, %s113
      %s115 = sphi 0, %s113
      %s116 = sphi 0, %s115
      %s130 = sphi 0, %s116
      %s134 = sphi 0, %s134
      %s136 = sphi 0, %s134
      %s137 = sphi 0, %s136
      %s151 = sphi 0, %s137
      %s155 = sphi 0, %s155
      %s157 = sphi 0, %s155
      %s158 = sphi 0, %s157
      %s172 = sphi 0, %s158
      %s178 = sphi 0, %s180
      %s181 = sphi 0, %s178
      %s182 = sphi 0, %s181
      %s198 = sphi 0, %s182
    $region4: #{tpu_custom_call.1} parent=1 // loop_header_branch
      %19 = sbr.rel (%p17) target = $region8
    $region5: #{tpu_custom_call.1} parent=1 // loop_body
      %s21 = ssub.s32 %s16, 1
      %s22 = ssub.s32 %s16, 2
      %s23 = sadd.s32 %s16, 1
      %s24 = ssub.s32 %s16, %s23
      %p25 = scmp.eq.s32.totalorder %s24, 0
      %s27 = sadd.s32 %s26, 1
      %s28 = scalar_select %p25, %s26, %s27
      %p31 = pneg %p25
      %p32 = scmp.eq.s32.totalorder %s16, 1
      %p33 = por %p31, %p32
      %p34 = scmp.ne.s32.totalorder %s26, %s29
      %p35 = scmp.eq.s32.totalorder %s16, 0
      %p36 = por %p34, %p35
      %p37 = scmp.ne.s32.totalorder %s26, %s29
      %p38 = scmp.eq.s32.totalorder %s21, 1
      %p39 = por %p37, %p38
      %p40 = scmp.ne.s32.totalorder %s29, %s30
      %p41 = scmp.eq.s32.totalorder %s21, 0
      %p42 = por %p40, %p41
      %p43 = scmp.ne.s32.totalorder %s29, %s30
      %p44 = scmp.eq.s32.totalorder %s22, 1
      %p45 = por %p43, %p44
      %p47 = scmp.ne.s32.totalorder %s30, %s46
      %p48 = scmp.eq.s32.totalorder %s22, 0
      %p49 = por %p47, %p48
      %s51 = sadd.s32 %s50, 1
      %p54 = scmp.eq.s32.totalorder %s16, 1
      %p55 = scmp.ne.s32.totalorder %s50, %s52
      %p56 = scmp.eq.s32.totalorder %s16, 0
      %p57 = por %p55, %p56
      %p58 = scmp.ne.s32.totalorder %s50, %s52
      %p59 = scmp.eq.s32.totalorder %s21, 1
      %p60 = por %p58, %p59
      %p61 = scmp.ne.s32.totalorder %s52, %s53
      %p62 = scmp.eq.s32.totalorder %s21, 0
      %p63 = por %p61, %p62
      %p64 = scmp.ne.s32.totalorder %s52, %s53
      %p65 = scmp.eq.s32.totalorder %s22, 1
      %p66 = por %p64, %p65
      %p68 = scmp.ne.s32.totalorder %s53, %s67
      %p69 = scmp.eq.s32.totalorder %s22, 0
      %p70 = por %p68, %p69
      %s72 = sadd.s32 %s71, 1
      %p75 = scmp.eq.s32.totalorder %s16, 1
      %p76 = scmp.ne.s32.totalorder %s71, %s73
      %p77 = scmp.eq.s32.totalorder %s16, 0
      %p78 = por %p76, %p77
      %p79 = scmp.ne.s32.totalorder %s71, %s73
      %p80 = scmp.eq.s32.totalorder %s21, 1
      %p81 = por %p79, %p80
      %p82 = scmp.ne.s32.totalorder %s73, %s74
      %p83 = scmp.eq.s32.totalorder %s21, 0
      %p84 = por %p82, %p83
      %p85 = scmp.ne.s32.totalorder %s73, %s74
      %p86 = scmp.eq.s32.totalorder %s22, 1
      %p87 = por %p85, %p86
      %p89 = scmp.ne.s32.totalorder %s74, %s88
      %p90 = scmp.eq.s32.totalorder %s22, 0
      %p91 = por %p89, %p90
      %s93 = sadd.s32 %s92, 1
      %p96 = scmp.eq.s32.totalorder %s16, 1
      %p97 = scmp.ne.s32.totalorder %s92, %s94
      %p98 = scmp.eq.s32.totalorder %s16, 0
      %p99 = por %p97, %p98
      %p100 = scmp.ne.s32.totalorder %s92, %s94
      %p101 = scmp.eq.s32.totalorder %s21, 1
      %p102 = por %p100, %p101
      %p103 = scmp.ne.s32.totalorder %s94, %s95
      %p104 = scmp.eq.s32.totalorder %s21, 0
      %p105 = por %p103, %p104
      %p106 = scmp.ne.s32.totalorder %s94, %s95
      %p107 = scmp.eq.s32.totalorder %s22, 1
      %p108 = por %p106, %p107
      %p110 = scmp.ne.s32.totalorder %s95, %s109
      %p111 = scmp.eq.s32.totalorder %s22, 0
      %p112 = por %p110, %p111
      %s114 = sadd.s32 %s113, 1
      %p117 = scmp.eq.s32.totalorder %s16, 1
      %p118 = scmp.ne.s32.totalorder %s113, %s115
      %p119 = scmp.eq.s32.totalorder %s16, 0
      %p120 = por %p118, %p119
      %p121 = scmp.ne.s32.totalorder %s113, %s115
      %p122 = scmp.eq.s32.totalorder %s21, 1
      %p123 = por %p121, %p122
      %p124 = scmp.ne.s32.totalorder %s115, %s116
      %p125 = scmp.eq.s32.totalorder %s21, 0
      %p126 = por %p124, %p125
      %p127 = scmp.ne.s32.totalorder %s115, %s116
      %p128 = scmp.eq.s32.totalorder %s22, 1
      %p129 = por %p127, %p128
      %p131 = scmp.ne.s32.totalorder %s116, %s130
      %p132 = scmp.eq.s32.totalorder %s22, 0
      %p133 = por %p131, %p132
      %s135 = sadd.s32 %s134, 1
      %p138 = scmp.eq.s32.totalorder %s16, 1
      %p139 = scmp.ne.s32.totalorder %s134, %s136
      %p140 = scmp.eq.s32.totalorder %s16, 0
      %p141 = por %p139, %p140
      %p142 = scmp.ne.s32.totalorder %s134, %s136
      %p143 = scmp.eq.s32.totalorder %s21, 1
      %p144 = por %p142, %p143
      %p145 = scmp.ne.s32.totalorder %s136, %s137
      %p146 = scmp.eq.s32.totalorder %s21, 0
      %p147 = por %p145, %p146
      %p148 = scmp.ne.s32.totalorder %s136, %s137
      %p149 = scmp.eq.s32.totalorder %s22, 1
      %p150 = por %p148, %p149
      %p152 = scmp.ne.s32.totalorder %s137, %s151
      %p153 = scmp.eq.s32.totalorder %s22, 0
      %p154 = por %p152, %p153
      %s156 = sadd.s32 %s155, 1
      %p159 = scmp.eq.s32.totalorder %s16, 1
      %p160 = scmp.ne.s32.totalorder %s155, %s157
      %p161 = scmp.eq.s32.totalorder %s16, 0
      %p162 = por %p160, %p161
      %p163 = scmp.ne.s32.totalorder %s155, %s157
      %p164 = scmp.eq.s32.totalorder %s21, 1
      %p165 = por %p163, %p164
      %p166 = scmp.ne.s32.totalorder %s157, %s158
      %p167 = scmp.eq.s32.totalorder %s21, 0
      %p168 = por %p166, %p167
      %p169 = scmp.ne.s32.totalorder %s157, %s158
      %p170 = scmp.eq.s32.totalorder %s22, 1
      %p171 = por %p169, %p170
      %p173 = scmp.ne.s32.totalorder %s158, %s172
      %p174 = scmp.eq.s32.totalorder %s22, 0
      %p175 = por %p173, %p174
      %s176 = ssub.s32 %s16, %s23
      %p177 = scmp.eq.s32.totalorder %s176, 0
      %s179 = sadd.s32 %s178, 1
      %s180 = scalar_select %p177, %s178, %s179
      %p183 = pneg %p177
      %p184 = scmp.eq.s32.totalorder %s16, 1
      %p185 = por %p183, %p184
      %p186 = scmp.ne.s32.totalorder %s178, %s181
      %p187 = scmp.eq.s32.totalorder %s16, 0
      %p188 = por %p186, %p187
      %p189 = scmp.ne.s32.totalorder %s178, %s181
      %p190 = scmp.eq.s32.totalorder %s21, 1
      %p191 = por %p189, %p190
      %p192 = scmp.ne.s32.totalorder %s181, %s182
      %p193 = scmp.eq.s32.totalorder %s21, 0
      %p194 = por %p192, %p193
      %p195 = scmp.ne.s32.totalorder %s181, %s182
      %p196 = scmp.eq.s32.totalorder %s22, 1
      %p197 = por %p195, %p196
      %p199 = scmp.ne.s32.totalorder %s182, %s198
      %p200 = scmp.eq.s32.totalorder %s22, 0
      %p201 = por %p199, %p200
      %p202 = scmp.le.s32.totalorder 1, %s16
      %p203 = scmp.lt.s32.totalorder %s16, 3
      %p204 = pnand %p202, %p203
      %p205 = pneg %p204
      // Predicated region
      $region9: #{tpu_custom_call.1} parent=5 // pred_check
        _
      $region10: #{tpu_custom_call.1} parent=5 // pred_check_branch
        %207 = sbr.rel (%p204) target = $region12
      $region11: #{tpu_custom_call.1} parent=5 // pred_region
        %s208 = ssub.s32 %s16, 1
        // Predicated region
        $region13: #{tpu_custom_call.1} parent=11 // pred_check
          %p209 = pneg %p63
        $region14: #{tpu_custom_call.1} parent=11 // pred_check_branch
          %211 = sbr.rel (%p209) target = $region16
        $region15: #{tpu_custom_call.1} parent=11 // pred_region
          _
        $region16: #{tpu_custom_call.1} parent=11 // pred_fallthru
          _
        // Predicated region
        $region17: #{tpu_custom_call.1} parent=11 // pred_check
          %p212 = pneg %p84
        $region18: #{tpu_custom_call.1} parent=11 // pred_check_branch
          %214 = sbr.rel (%p212) target = $region20
        $region19: #{tpu_custom_call.1} parent=11 // pred_region
          _
        $region20: #{tpu_custom_call.1} parent=11 // pred_fallthru
          _
        // Predicated region
        $region21: #{tpu_custom_call.1} parent=11 // pred_check
          %p215 = pneg %p105
        $region22: #{tpu_custom_call.1} parent=11 // pred_check_branch
          %217 = sbr.rel (%p215) target = $region24
        $region23: #{tpu_custom_call.1} parent=11 // pred_region
          _
        $region24: #{tpu_custom_call.1} parent=11 // pred_fallthru
          _
        // Predicated region
        $region25: #{tpu_custom_call.1} parent=11 // pred_check
          %p218 = pneg %p126
        $region26: #{tpu_custom_call.1} parent=11 // pred_check_branch
          %220 = sbr.rel (%p218) target = $region28
        $region27: #{tpu_custom_call.1} parent=11 // pred_region
          _
        $region28: #{tpu_custom_call.1} parent=11 // pred_fallthru
          _
        // Predicated region
        $region29: #{tpu_custom_call.1} parent=11 // pred_check
          %p221 = pneg %p147
        $region30: #{tpu_custom_call.1} parent=11 // pred_check_branch
          %223 = sbr.rel (%p221) target = $region32
        $region31: #{tpu_custom_call.1} parent=11 // pred_region
          _
        $region32: #{tpu_custom_call.1} parent=11 // pred_fallthru
          _
        // Predicated region
        $region33: #{tpu_custom_call.1} parent=11 // pred_check
          %p224 = pneg %p168
        $region34: #{tpu_custom_call.1} parent=11 // pred_check_branch
          %226 = sbr.rel (%p224) target = $region36
        $region35: #{tpu_custom_call.1} parent=11 // pred_region
          _
        $region36: #{tpu_custom_call.1} parent=11 // pred_fallthru
          _
      $region12: #{tpu_custom_call.1} parent=5 // pred_fallthru
        _
      %p227 = scmp.lt.s32.totalorder %s16, 2
      // Predicated region
      $region37: #{tpu_custom_call.1} parent=5 // pred_check
        %p228 = pneg %p227
      $region38: #{tpu_custom_call.1} parent=5 // pred_check_branch
        %230 = sbr.rel (%p228) target = $region40
      $region39: #{tpu_custom_call.1} parent=5 // pred_region
        // Predicated region
        $region41: #{tpu_custom_call.1} parent=39 // pred_check
          %p231 = pneg %p36
        $region42: #{tpu_custom_call.1} parent=39 // pred_check_branch
          %233 = sbr.rel (%p231) target = $region44
        $region43: #{tpu_custom_call.1} parent=39 // pred_region
          %s234 = smul.u32 2, %s16
          %p235 = scmp.lt.s32.totalorder %s234, 3
          %s236 = scalar_select %p235, %s234, 3
          %s237 = smul.addr %s236, 2
          %s238 = scalar_lea.vmem %s0, %s237
          %s239 = smul.u32 2, %s16
        $region44: #{tpu_custom_call.1} parent=39 // pred_fallthru
          _
      $region40: #{tpu_custom_call.1} parent=5 // pred_fallthru
        _
      %p240 = scmp.le.s32.totalorder 1, %s16
      %p241 = scmp.lt.s32.totalorder %s16, 3
      %p242 = pnand %p240, %p241
      %p243 = pneg %p242
      // Predicated region
      $region45: #{tpu_custom_call.1} parent=5 // pred_check
        _
      $region46: #{tpu_custom_call.1} parent=5 // pred_check_branch
        %245 = sbr.rel (%p242) target = $region48
      $region47: #{tpu_custom_call.1} parent=5 // pred_region
        %s246 = ssub.s32 %s16, 1
        %s247 = smul.u32 2, %s21
        %p248 = scmp.lt.s32.totalorder %s247, 3
        %s249 = scalar_select %p248, %s247, 3
        %s250 = smul.addr %s249, 2
        %s251 = scalar_lea.vmem %s0, %s250
        %p252 = pneg %p42
        %p253 = pneg %p39
        %p254 = pneg %p63
        %p255 = pneg %p60
        %p256 = pneg %p84
        %p257 = pneg %p81
        %p258 = pneg %p105
        %p259 = pneg %p102
        %p260 = pneg %p126
        %p261 = pneg %p123
        %p262 = pneg %p147
        %p263 = pneg %p144
        %p264 = pneg %p168
        %p265 = pneg %p165
        %p266 = pneg %p194
        %p267 = pneg %p191
        %s268 = sand.u32 %s181, 1
        %s269 = scalar_lea.sflag [#allocation3], %s268
        %s270 = sand.u32 %s181, 1
        %s271 = smul.addr %s270, 4
        %s272 = scalar_lea.vmem [#allocation2], %s271
        %s273 = smul.u32 2, %s21
        %p274 = scmp.lt.s32.totalorder %s273, 3
        %s275 = scalar_select %p274, %s273, 3
        %s276 = smul.addr %s275, 2
        %s277 = scalar_lea.vmem %s0, %s276
        %s278 = smul.u32 2, %s21
        %s279 = smul.u32 2, %s21
        %v280 = vld [vmem:[%s277] sm:$0xf]
        %v281 = vld [vmem:[%s1] sm:$0xff]
        %v282 = vld [vmem:[%s1 + $0x8] sm:$0xff]
        %v283 = vld [vmem:[%s2] sm:$0xff]
        %v284 = vld [vmem:[%s2 + $0x8] sm:$0xff]
        %286 = vset.pattern.permute.xlu0 0
        %287 = vperm.xlu0 %286, %v283
        %v288 = vpop.permute.xlu0 %287
        %291 = vset.pattern.permute.xlu0 0
        %292 = vperm.xlu0 %291, %v284
        %v293 = vpop.permute.xlu0 %292
        %296 = vset.pattern.permute.xlu0 0
        %297 = vperm.xlu0 %296, %v281
        %v298 = vpop.permute.xlu0 %297
        %301 = vset.pattern.permute.xlu0 0
        %302 = vperm.xlu0 %301, %v282
        %v303 = vpop.permute.xlu0 %302
        %v306 = vlaneseq
        %v307 = vshrl.u32 %v306, 7
        %v308 = vsub.s32 0, %v307
        %v309 = vrot.slane %v280, %v308
        %v310 = vlaneseq
        %v311 = vshrl.u32 %v310, 7
        %v312 = vsub.s32 2, %v311
        %v313 = vrot.slane %v280, %v312
        %v316 = vlaneseq
        %v317 = vshrl.u32 %v316, 7
        %v318 = vsub.s32 0, %v317
        %v319 = vrot.slane %v309, %v318
        %v320 = vlaneseq
        %v321 = vshrl.u32 %v320, 7
        %v322 = vsub.s32 0, %v321
        %v323 = vrot.slane %v313, %v322
        %v324 = vmul.f32 %v298, %v319
        %v325 = vmul.f32 %v298, %v323
        %v326 = vmul.f32 %v303, %v319
        %v327 = vmul.f32 %v303, %v323
        %v328 = vadd.f32 %v288, %v324
        %v329 = vadd.f32 %v288, %v325
        %v330 = vadd.f32 %v293, %v326
        %v331 = vadd.f32 %v293, %v327
        %332 = vset.pattern.permute.xlu0 1
        %333 = vperm.xlu0 %332, %v281
        %v334 = vpop.permute.xlu0 %333
        %336 = vset.pattern.permute.xlu0 1
        %337 = vperm.xlu0 %336, %v282
        %v338 = vpop.permute.xlu0 %337
        %v340 = vlaneseq
        %v341 = vshrl.u32 %v340, 7
        %v342 = vsub.s32 1, %v341
        %v343 = vrot.slane %v280, %v342
        %v344 = vlaneseq
        %v345 = vshrl.u32 %v344, 7
        %v346 = vsub.s32 3, %v345
        %v347 = vrot.slane %v280, %v346
        %v350 = vlaneseq
        %v351 = vshrl.u32 %v350, 7
        %v352 = vsub.s32 1, %v351
        %v353 = vrot.slane %v343, %v352
        %v354 = vlaneseq
        %v355 = vshrl.u32 %v354, 7
        %v356 = vsub.s32 1, %v355
        %v357 = vrot.slane %v347, %v356
        %v358 = vmul.f32 %v334, %v353
        %v359 = vmul.f32 %v334, %v357
        %v360 = vmul.f32 %v338, %v353
        %v361 = vmul.f32 %v338, %v357
        %v362 = vadd.f32 %v328, %v358
        %v363 = vadd.f32 %v329, %v359
        %v364 = vadd.f32 %v330, %v360
        %v365 = vadd.f32 %v331, %v361
        %vm366 = vcmp.gt.f32.partialorder %v362, 0.0
        %vm367 = vcmp.gt.f32.partialorder %v363, 0.0
        %vm368 = vcmp.gt.f32.partialorder %v364, 0.0
        %vm369 = vcmp.gt.f32.partialorder %v365, 0.0
        %v370 = vmul.f32 %v362, 0.2
        %v371 = vmul.f32 %v363, 0.2
        %v372 = vmul.f32 %v364, 0.2
        %v373 = vmul.f32 %v365, 0.2
        %v374 = vsel %vm366, %v362, %v370
        %v375 = vsel %vm367, %v363, %v371
        %v376 = vsel %vm368, %v364, %v372
        %v377 = vsel %vm369, %v365, %v373
        %v378 = vld [vmem:[%s3] sm:$0xff]
        %v379 = vld [vmem:[%s3 + $0x8] sm:$0xff]
        %v380 = vld [vmem:[%s4] sm:$0xff]
        %v381 = vld [vmem:[%s4 + $0x8] sm:$0xff]
        %383 = vset.pattern.permute.xlu0 0
        %384 = vperm.xlu0 %383, %v380
        %v385 = vpop.permute.xlu0 %384
        %388 = vset.pattern.permute.xlu0 0
        %389 = vperm.xlu0 %388, %v381
        %v390 = vpop.permute.xlu0 %389
        %393 = vset.pattern.permute.xlu0 0
        %394 = vperm.xlu0 %393, %v378
        %v395 = vpop.permute.xlu0 %394
        %398 = vset.pattern.permute.xlu0 0
        %399 = vperm.xlu0 %398, %v379
        %v400 = vpop.permute.xlu0 %399
        %v402 = vlaneseq
        %v403 = vshrl.u32 %v402, 7
        %v404 = vsub.s32 0, %v403
        %v405 = vrot.slane %v374, %v404
        %v406 = vlaneseq
        %v407 = vshrl.u32 %v406, 7
        %v408 = vsub.s32 0, %v407
        %v409 = vrot.slane %v375, %v408
        %v410 = vmul.f32 %v395, %v405
        %v411 = vmul.f32 %v395, %v409
        %v412 = vmul.f32 %v400, %v405
        %v413 = vmul.f32 %v400, %v409
        %v414 = vadd.f32 %v385, %v410
        %v415 = vadd.f32 %v385, %v411
        %v416 = vadd.f32 %v390, %v412
        %v417 = vadd.f32 %v390, %v413
        %418 = vset.pattern.permute.xlu0 1
        %419 = vperm.xlu0 %418, %v378
        %v420 = vpop.permute.xlu0 %419
        %422 = vset.pattern.permute.xlu0 1
        %423 = vperm.xlu0 %422, %v379
        %v424 = vpop.permute.xlu0 %423
        %v426 = vlaneseq
        %v427 = vshrl.u32 %v426, 7
        %v428 = vsub.s32 1, %v427
        %v429 = vrot.slane %v374, %v428
        %v430 = vlaneseq
        %v431 = vshrl.u32 %v430, 7
        %v432 = vsub.s32 1, %v431
        %v433 = vrot.slane %v375, %v432
        %v434 = vmul.f32 %v420, %v429
        %v435 = vmul.f32 %v420, %v433
        %v436 = vmul.f32 %v424, %v429
        %v437 = vmul.f32 %v424, %v433
        %v438 = vadd.f32 %v414, %v434
        %v439 = vadd.f32 %v415, %v435
        %v440 = vadd.f32 %v416, %v436
        %v441 = vadd.f32 %v417, %v437
        %442 = vset.pattern.permute.xlu0 2
        %443 = vperm.xlu0 %442, %v378
        %v444 = vpop.permute.xlu0 %443
        %446 = vset.pattern.permute.xlu0 2
        %447 = vperm.xlu0 %446, %v379
        %v448 = vpop.permute.xlu0 %447
        %v450 = vlaneseq
        %v451 = vshrl.u32 %v450, 7
        %v452 = vsub.s32 2, %v451
        %v453 = vrot.slane %v374, %v452
        %v454 = vlaneseq
        %v455 = vshrl.u32 %v454, 7
        %v456 = vsub.s32 2, %v455
        %v457 = vrot.slane %v375, %v456
        %v458 = vmul.f32 %v444, %v453
        %v459 = vmul.f32 %v444, %v457
        %v460 = vmul.f32 %v448, %v453
        %v461 = vmul.f32 %v448, %v457
        %v462 = vadd.f32 %v438, %v458
        %v463 = vadd.f32 %v439, %v459
        %v464 = vadd.f32 %v440, %v460
        %v465 = vadd.f32 %v441, %v461
        %466 = vset.pattern.permute.xlu0 3
        %467 = vperm.xlu0 %466, %v378
        %v468 = vpop.permute.xlu0 %467
        %470 = vset.pattern.permute.xlu0 3
        %471 = vperm.xlu0 %470, %v379
        %v472 = vpop.permute.xlu0 %471
        %v474 = vlaneseq
        %v475 = vshrl.u32 %v474, 7
        %v476 = vsub.s32 3, %v475
        %v477 = vrot.slane %v374, %v476
        %v478 = vlaneseq
        %v479 = vshrl.u32 %v478, 7
        %v480 = vsub.s32 3, %v479
        %v481 = vrot.slane %v375, %v480
        %v482 = vmul.f32 %v468, %v477
        %v483 = vmul.f32 %v468, %v481
        %v484 = vmul.f32 %v472, %v477
        %v485 = vmul.f32 %v472, %v481
        %v486 = vadd.f32 %v462, %v482
        %v487 = vadd.f32 %v463, %v483
        %v488 = vadd.f32 %v464, %v484
        %v489 = vadd.f32 %v465, %v485
        %490 = vset.pattern.permute.xlu0 4
        %491 = vperm.xlu0 %490, %v378
        %v492 = vpop.permute.xlu0 %491
        %494 = vset.pattern.permute.xlu0 4
        %495 = vperm.xlu0 %494, %v379
        %v496 = vpop.permute.xlu0 %495
        %v498 = vlaneseq
        %v499 = vshrl.u32 %v498, 7
        %v500 = vsub.s32 4, %v499
        %v501 = vrot.slane %v374, %v500
        %v502 = vlaneseq
        %v503 = vshrl.u32 %v502, 7
        %v504 = vsub.s32 4, %v503
        %v505 = vrot.slane %v375, %v504
        %v506 = vmul.f32 %v492, %v501
        %v507 = vmul.f32 %v492, %v505
        %v508 = vmul.f32 %v496, %v501
        %v509 = vmul.f32 %v496, %v505
        %v510 = vadd.f32 %v486, %v506
        %v511 = vadd.f32 %v487, %v507
        %v512 = vadd.f32 %v488, %v508
        %v513 = vadd.f32 %v489, %v509
        %514 = vset.pattern.permute.xlu0 5
        %515 = vperm.xlu0 %514, %v378
        %v516 = vpop.permute.xlu0 %515
        %518 = vset.pattern.permute.xlu0 5
        %519 = vperm.xlu0 %518, %v379
        %v520 = vpop.permute.xlu0 %519
        %v522 = vlaneseq
        %v523 = vshrl.u32 %v522, 7
        %v524 = vsub.s32 5, %v523
        %v525 = vrot.slane %v374, %v524
        %v526 = vlaneseq
        %v527 = vshrl.u32 %v526, 7
        %v528 = vsub.s32 5, %v527
        %v529 = vrot.slane %v375, %v528
        %v530 = vmul.f32 %v516, %v525
        %v531 = vmul.f32 %v516, %v529
        %v532 = vmul.f32 %v520, %v525
        %v533 = vmul.f32 %v520, %v529
        %v534 = vadd.f32 %v510, %v530
        %v535 = vadd.f32 %v511, %v531
        %v536 = vadd.f32 %v512, %v532
        %v537 = vadd.f32 %v513, %v533
        %538 = vset.pattern.permute.xlu0 6
        %539 = vperm.xlu0 %538, %v378
        %v540 = vpop.permute.xlu0 %539
        %542 = vset.pattern.permute.xlu0 6
        %543 = vperm.xlu0 %542, %v379
        %v544 = vpop.permute.xlu0 %543
        %v546 = vlaneseq
        %v547 = vshrl.u32 %v546, 7
        %v548 = vsub.s32 6, %v547
        %v549 = vrot.slane %v374, %v548
        %v550 = vlaneseq
        %v551 = vshrl.u32 %v550, 7
        %v552 = vsub.s32 6, %v551
        %v553 = vrot.slane %v375, %v552
        %v554 = vmul.f32 %v540, %v549
        %v555 = vmul.f32 %v540, %v553
        %v556 = vmul.f32 %v544, %v549
        %v557 = vmul.f32 %v544, %v553
        %v558 = vadd.f32 %v534, %v554
        %v559 = vadd.f32 %v535, %v555
        %v560 = vadd.f32 %v536, %v556
        %v561 = vadd.f32 %v537, %v557
        %562 = vset.pattern.permute.xlu0 7
        %563 = vperm.xlu0 %562, %v378
        %v564 = vpop.permute.xlu0 %563
        %566 = vset.pattern.permute.xlu0 7
        %567 = vperm.xlu0 %566, %v379
        %v568 = vpop.permute.xlu0 %567
        %v570 = vlaneseq
        %v571 = vshrl.u32 %v570, 7
        %v572 = vsub.s32 7, %v571
        %v573 = vrot.slane %v374, %v572
        %v574 = vlaneseq
        %v575 = vshrl.u32 %v574, 7
        %v576 = vsub.s32 7, %v575
        %v577 = vrot.slane %v375, %v576
        %v578 = vmul.f32 %v564, %v573
        %v579 = vmul.f32 %v564, %v577
        %v580 = vmul.f32 %v568, %v573
        %v581 = vmul.f32 %v568, %v577
        %v582 = vadd.f32 %v558, %v578
        %v583 = vadd.f32 %v559, %v579
        %v584 = vadd.f32 %v560, %v580
        %v585 = vadd.f32 %v561, %v581
        %586 = vset.pattern.permute.xlu0 8
        %587 = vperm.xlu0 %586, %v378
        %v588 = vpop.permute.xlu0 %587
        %590 = vset.pattern.permute.xlu0 8
        %591 = vperm.xlu0 %590, %v379
        %v592 = vpop.permute.xlu0 %591
        %v594 = vlaneseq
        %v595 = vshrl.u32 %v594, 7
        %v596 = vsub.s32 0, %v595
        %v597 = vrot.slane %v376, %v596
        %v598 = vlaneseq
        %v599 = vshrl.u32 %v598, 7
        %v600 = vsub.s32 0, %v599
        %v601 = vrot.slane %v377, %v600
        %v602 = vmul.f32 %v588, %v597
        %v603 = vmul.f32 %v588, %v601
        %v604 = vmul.f32 %v592, %v597
        %v605 = vmul.f32 %v592, %v601
        %v606 = vadd.f32 %v582, %v602
        %v607 = vadd.f32 %v583, %v603
        %v608 = vadd.f32 %v584, %v604
        %v609 = vadd.f32 %v585, %v605
        %610 = vset.pattern.permute.xlu0 9
        %611 = vperm.xlu0 %610, %v378
        %v612 = vpop.permute.xlu0 %611
        %614 = vset.pattern.permute.xlu0 9
        %615 = vperm.xlu0 %614, %v379
        %v616 = vpop.permute.xlu0 %615
        %v618 = vlaneseq
        %v619 = vshrl.u32 %v618, 7
        %v620 = vsub.s32 1, %v619
        %v621 = vrot.slane %v376, %v620
        %v622 = vlaneseq
        %v623 = vshrl.u32 %v622, 7
        %v624 = vsub.s32 1, %v623
        %v625 = vrot.slane %v377, %v624
        %v626 = vmul.f32 %v612, %v621
        %v627 = vmul.f32 %v612, %v625
        %v628 = vmul.f32 %v616, %v621
        %v629 = vmul.f32 %v616, %v625
        %v630 = vadd.f32 %v606, %v626
        %v631 = vadd.f32 %v607, %v627
        %v632 = vadd.f32 %v608, %v628
        %v633 = vadd.f32 %v609, %v629
        %634 = vset.pattern.permute.xlu0 10
        %635 = vperm.xlu0 %634, %v378
        %v636 = vpop.permute.xlu0 %635
        %638 = vset.pattern.permute.xlu0 10
        %639 = vperm.xlu0 %638, %v379
        %v640 = vpop.permute.xlu0 %639
        %v642 = vlaneseq
        %v643 = vshrl.u32 %v642, 7
        %v644 = vsub.s32 2, %v643
        %v645 = vrot.slane %v376, %v644
        %v646 = vlaneseq
        %v647 = vshrl.u32 %v646, 7
        %v648 = vsub.s32 2, %v647
        %v649 = vrot.slane %v377, %v648
        %v650 = vmul.f32 %v636, %v645
        %v651 = vmul.f32 %v636, %v649
        %v652 = vmul.f32 %v640, %v645
        %v653 = vmul.f32 %v640, %v649
        %v654 = vadd.f32 %v630, %v650
        %v655 = vadd.f32 %v631, %v651
        %v656 = vadd.f32 %v632, %v652
        %v657 = vadd.f32 %v633, %v653
        %658 = vset.pattern.permute.xlu0 11
        %659 = vperm.xlu0 %658, %v378
        %v660 = vpop.permute.xlu0 %659
        %662 = vset.pattern.permute.xlu0 11
        %663 = vperm.xlu0 %662, %v379
        %v664 = vpop.permute.xlu0 %663
        %v666 = vlaneseq
        %v667 = vshrl.u32 %v666, 7
        %v668 = vsub.s32 3, %v667
        %v669 = vrot.slane %v376, %v668
        %v670 = vlaneseq
        %v671 = vshrl.u32 %v670, 7
        %v672 = vsub.s32 3, %v671
        %v673 = vrot.slane %v377, %v672
        %v674 = vmul.f32 %v660, %v669
        %v675 = vmul.f32 %v660, %v673
        %v676 = vmul.f32 %v664, %v669
        %v677 = vmul.f32 %v664, %v673
        %v678 = vadd.f32 %v654, %v674
        %v679 = vadd.f32 %v655, %v675
        %v680 = vadd.f32 %v656, %v676
        %v681 = vadd.f32 %v657, %v677
        %682 = vset.pattern.permute.xlu0 12
        %683 = vperm.xlu0 %682, %v378
        %v684 = vpop.permute.xlu0 %683
        %686 = vset.pattern.permute.xlu0 12
        %687 = vperm.xlu0 %686, %v379
        %v688 = vpop.permute.xlu0 %687
        %v690 = vlaneseq
        %v691 = vshrl.u32 %v690, 7
        %v692 = vsub.s32 4, %v691
        %v693 = vrot.slane %v376, %v692
        %v694 = vlaneseq
        %v695 = vshrl.u32 %v694, 7
        %v696 = vsub.s32 4, %v695
        %v697 = vrot.slane %v377, %v696
        %v698 = vmul.f32 %v684, %v693
        %v699 = vmul.f32 %v684, %v697
        %v700 = vmul.f32 %v688, %v693
        %v701 = vmul.f32 %v688, %v697
        %v702 = vadd.f32 %v678, %v698
        %v703 = vadd.f32 %v679, %v699
        %v704 = vadd.f32 %v680, %v700
        %v705 = vadd.f32 %v681, %v701
        %706 = vset.pattern.permute.xlu0 13
        %707 = vperm.xlu0 %706, %v378
        %v708 = vpop.permute.xlu0 %707
        %710 = vset.pattern.permute.xlu0 13
        %711 = vperm.xlu0 %710, %v379
        %v712 = vpop.permute.xlu0 %711
        %v714 = vlaneseq
        %v715 = vshrl.u32 %v714, 7
        %v716 = vsub.s32 5, %v715
        %v717 = vrot.slane %v376, %v716
        %v718 = vlaneseq
        %v719 = vshrl.u32 %v718, 7
        %v720 = vsub.s32 5, %v719
        %v721 = vrot.slane %v377, %v720
        %v722 = vmul.f32 %v708, %v717
        %v723 = vmul.f32 %v708, %v721
        %v724 = vmul.f32 %v712, %v717
        %v725 = vmul.f32 %v712, %v721
        %v726 = vadd.f32 %v702, %v722
        %v727 = vadd.f32 %v703, %v723
        %v728 = vadd.f32 %v704, %v724
        %v729 = vadd.f32 %v705, %v725
        %730 = vset.pattern.permute.xlu0 14
        %731 = vperm.xlu0 %730, %v378
        %v732 = vpop.permute.xlu0 %731
        %734 = vset.pattern.permute.xlu0 14
        %735 = vperm.xlu0 %734, %v379
        %v736 = vpop.permute.xlu0 %735
        %v738 = vlaneseq
        %v739 = vshrl.u32 %v738, 7
        %v740 = vsub.s32 6, %v739
        %v741 = vrot.slane %v376, %v740
        %v742 = vlaneseq
        %v743 = vshrl.u32 %v742, 7
        %v744 = vsub.s32 6, %v743
        %v745 = vrot.slane %v377, %v744
        %v746 = vmul.f32 %v732, %v741
        %v747 = vmul.f32 %v732, %v745
        %v748 = vmul.f32 %v736, %v741
        %v749 = vmul.f32 %v736, %v745
        %v750 = vadd.f32 %v726, %v746
        %v751 = vadd.f32 %v727, %v747
        %v752 = vadd.f32 %v728, %v748
        %v753 = vadd.f32 %v729, %v749
        %754 = vset.pattern.permute.xlu0 15
        %755 = vperm.xlu0 %754, %v378
        %v756 = vpop.permute.xlu0 %755
        %758 = vset.pattern.permute.xlu0 15
        %759 = vperm.xlu0 %758, %v379
        %v760 = vpop.permute.xlu0 %759
        %v762 = vlaneseq
        %v763 = vshrl.u32 %v762, 7
        %v764 = vsub.s32 7, %v763
        %v765 = vrot.slane %v376, %v764
        %v766 = vlaneseq
        %v767 = vshrl.u32 %v766, 7
        %v768 = vsub.s32 7, %v767
        %v769 = vrot.slane %v377, %v768
        %v770 = vmul.f32 %v756, %v765
        %v771 = vmul.f32 %v756, %v769
        %v772 = vmul.f32 %v760, %v765
        %v773 = vmul.f32 %v760, %v769
        %v774 = vadd.f32 %v750, %v770
        %v775 = vadd.f32 %v751, %v771
        %v776 = vadd.f32 %v752, %v772
        %v777 = vadd.f32 %v753, %v773
        %vm778 = vcmp.gt.f32.partialorder %v774, 0.0
        %vm779 = vcmp.gt.f32.partialorder %v775, 0.0
        %vm780 = vcmp.gt.f32.partialorder %v776, 0.0
        %vm781 = vcmp.gt.f32.partialorder %v777, 0.0
        %v782 = vmul.f32 %v774, 0.2
        %v783 = vmul.f32 %v775, 0.2
        %v784 = vmul.f32 %v776, 0.2
        %v785 = vmul.f32 %v777, 0.2
        %v786 = vsel %vm778, %v774, %v782
        %v787 = vsel %vm779, %v775, %v783
        %v788 = vsel %vm780, %v776, %v784
        %v789 = vsel %vm781, %v777, %v785
        %v790 = vld [vmem:[%s5] sm:$0x3]
        %v791 = vld [vmem:[%s6] sm:$0x3]
        %793 = vset.pattern.permute.xlu0 0
        %794 = vperm.xlu0 %793, %v791
        %v795 = vpop.permute.xlu0 %794
        %798 = vset.pattern.permute.xlu0 0
        %799 = vperm.xlu0 %798, %v790
        %v800 = vpop.permute.xlu0 %799
        %v802 = vlaneseq
        %v803 = vshrl.u32 %v802, 7
        %v804 = vsub.s32 0, %v803
        %v805 = vrot.slane %v786, %v804
        %v806 = vlaneseq
        %v807 = vshrl.u32 %v806, 7
        %v808 = vsub.s32 0, %v807
        %v809 = vrot.slane %v787, %v808
        %v810 = vmul.f32 %v800, %v805
        %v811 = vmul.f32 %v800, %v809
        %v812 = vadd.f32 %v795, %v810
        %v813 = vadd.f32 %v795, %v811
        %814 = vset.pattern.permute.xlu0 1
        %815 = vperm.xlu0 %814, %v790
        %v816 = vpop.permute.xlu0 %815
        %v818 = vlaneseq
        %v819 = vshrl.u32 %v818, 7
        %v820 = vsub.s32 1, %v819
        %v821 = vrot.slane %v786, %v820
        %v822 = vlaneseq
        %v823 = vshrl.u32 %v822, 7
        %v824 = vsub.s32 1, %v823
        %v825 = vrot.slane %v787, %v824
        %v826 = vmul.f32 %v816, %v821
        %v827 = vmul.f32 %v816, %v825
        %v828 = vadd.f32 %v812, %v826
        %v829 = vadd.f32 %v813, %v827
        %830 = vset.pattern.permute.xlu0 2
        %831 = vperm.xlu0 %830, %v790
        %v832 = vpop.permute.xlu0 %831
        %v834 = vlaneseq
        %v835 = vshrl.u32 %v834, 7
        %v836 = vsub.s32 2, %v835
        %v837 = vrot.slane %v786, %v836
        %v838 = vlaneseq
        %v839 = vshrl.u32 %v838, 7
        %v840 = vsub.s32 2, %v839
        %v841 = vrot.slane %v787, %v840
        %v842 = vmul.f32 %v832, %v837
        %v843 = vmul.f32 %v832, %v841
        %v844 = vadd.f32 %v828, %v842
        %v845 = vadd.f32 %v829, %v843
        %846 = vset.pattern.permute.xlu0 3
        %847 = vperm.xlu0 %846, %v790
        %v848 = vpop.permute.xlu0 %847
        %v850 = vlaneseq
        %v851 = vshrl.u32 %v850, 7
        %v852 = vsub.s32 3, %v851
        %v853 = vrot.slane %v786, %v852
        %v854 = vlaneseq
        %v855 = vshrl.u32 %v854, 7
        %v856 = vsub.s32 3, %v855
        %v857 = vrot.slane %v787, %v856
        %v858 = vmul.f32 %v848, %v853
        %v859 = vmul.f32 %v848, %v857
        %v860 = vadd.f32 %v844, %v858
        %v861 = vadd.f32 %v845, %v859
        %862 = vset.pattern.permute.xlu0 4
        %863 = vperm.xlu0 %862, %v790
        %v864 = vpop.permute.xlu0 %863
        %v866 = vlaneseq
        %v867 = vshrl.u32 %v866, 7
        %v868 = vsub.s32 4, %v867
        %v869 = vrot.slane %v786, %v868
        %v870 = vlaneseq
        %v871 = vshrl.u32 %v870, 7
        %v872 = vsub.s32 4, %v871
        %v873 = vrot.slane %v787, %v872
        %v874 = vmul.f32 %v864, %v869
        %v875 = vmul.f32 %v864, %v873
        %v876 = vadd.f32 %v860, %v874
        %v877 = vadd.f32 %v861, %v875
        %878 = vset.pattern.permute.xlu0 5
        %879 = vperm.xlu0 %878, %v790
        %v880 = vpop.permute.xlu0 %879
        %v882 = vlaneseq
        %v883 = vshrl.u32 %v882, 7
        %v884 = vsub.s32 5, %v883
        %v885 = vrot.slane %v786, %v884
        %v886 = vlaneseq
        %v887 = vshrl.u32 %v886, 7
        %v888 = vsub.s32 5, %v887
        %v889 = vrot.slane %v787, %v888
        %v890 = vmul.f32 %v880, %v885
        %v891 = vmul.f32 %v880, %v889
        %v892 = vadd.f32 %v876, %v890
        %v893 = vadd.f32 %v877, %v891
        %894 = vset.pattern.permute.xlu0 6
        %895 = vperm.xlu0 %894, %v790
        %v896 = vpop.permute.xlu0 %895
        %v898 = vlaneseq
        %v899 = vshrl.u32 %v898, 7
        %v900 = vsub.s32 6, %v899
        %v901 = vrot.slane %v786, %v900
        %v902 = vlaneseq
        %v903 = vshrl.u32 %v902, 7
        %v904 = vsub.s32 6, %v903
        %v905 = vrot.slane %v787, %v904
        %v906 = vmul.f32 %v896, %v901
        %v907 = vmul.f32 %v896, %v905
        %v908 = vadd.f32 %v892, %v906
        %v909 = vadd.f32 %v893, %v907
        %910 = vset.pattern.permute.xlu0 7
        %911 = vperm.xlu0 %910, %v790
        %v912 = vpop.permute.xlu0 %911
        %v914 = vlaneseq
        %v915 = vshrl.u32 %v914, 7
        %v916 = vsub.s32 7, %v915
        %v917 = vrot.slane %v786, %v916
        %v918 = vlaneseq
        %v919 = vshrl.u32 %v918, 7
        %v920 = vsub.s32 7, %v919
        %v921 = vrot.slane %v787, %v920
        %v922 = vmul.f32 %v912, %v917
        %v923 = vmul.f32 %v912, %v921
        %v924 = vadd.f32 %v908, %v922
        %v925 = vadd.f32 %v909, %v923
        %926 = vset.pattern.permute.xlu0 8
        %927 = vperm.xlu0 %926, %v790
        %v928 = vpop.permute.xlu0 %927
        %v930 = vlaneseq
        %v931 = vshrl.u32 %v930, 7
        %v932 = vsub.s32 0, %v931
        %v933 = vrot.slane %v788, %v932
        %v934 = vlaneseq
        %v935 = vshrl.u32 %v934, 7
        %v936 = vsub.s32 0, %v935
        %v937 = vrot.slane %v789, %v936
        %v938 = vmul.f32 %v928, %v933
        %v939 = vmul.f32 %v928, %v937
        %v940 = vadd.f32 %v924, %v938
        %v941 = vadd.f32 %v925, %v939
        %942 = vset.pattern.permute.xlu0 9
        %943 = vperm.xlu0 %942, %v790
        %v944 = vpop.permute.xlu0 %943
        %v946 = vlaneseq
        %v947 = vshrl.u32 %v946, 7
        %v948 = vsub.s32 1, %v947
        %v949 = vrot.slane %v788, %v948
        %v950 = vlaneseq
        %v951 = vshrl.u32 %v950, 7
        %v952 = vsub.s32 1, %v951
        %v953 = vrot.slane %v789, %v952
        %v954 = vmul.f32 %v944, %v949
        %v955 = vmul.f32 %v944, %v953
        %v956 = vadd.f32 %v940, %v954
        %v957 = vadd.f32 %v941, %v955
        %958 = vset.pattern.permute.xlu0 10
        %959 = vperm.xlu0 %958, %v790
        %v960 = vpop.permute.xlu0 %959
        %v962 = vlaneseq
        %v963 = vshrl.u32 %v962, 7
        %v964 = vsub.s32 2, %v963
        %v965 = vrot.slane %v788, %v964
        %v966 = vlaneseq
        %v967 = vshrl.u32 %v966, 7
        %v968 = vsub.s32 2, %v967
        %v969 = vrot.slane %v789, %v968
        %v970 = vmul.f32 %v960, %v965
        %v971 = vmul.f32 %v960, %v969
        %v972 = vadd.f32 %v956, %v970
        %v973 = vadd.f32 %v957, %v971
        %974 = vset.pattern.permute.xlu0 11
        %975 = vperm.xlu0 %974, %v790
        %v976 = vpop.permute.xlu0 %975
        %v978 = vlaneseq
        %v979 = vshrl.u32 %v978, 7
        %v980 = vsub.s32 3, %v979
        %v981 = vrot.slane %v788, %v980
        %v982 = vlaneseq
        %v983 = vshrl.u32 %v982, 7
        %v984 = vsub.s32 3, %v983
        %v985 = vrot.slane %v789, %v984
        %v986 = vmul.f32 %v976, %v981
        %v987 = vmul.f32 %v976, %v985
        %v988 = vadd.f32 %v972, %v986
        %v989 = vadd.f32 %v973, %v987
        %990 = vset.pattern.permute.xlu0 12
        %991 = vperm.xlu0 %990, %v790
        %v992 = vpop.permute.xlu0 %991
        %v994 = vlaneseq
        %v995 = vshrl.u32 %v994, 7
        %v996 = vsub.s32 4, %v995
        %v997 = vrot.slane %v788, %v996
        %v998 = vlaneseq
        %v999 = vshrl.u32 %v998, 7
        %v1000 = vsub.s32 4, %v999
        %v1001 = vrot.slane %v789, %v1000
        %v1002 = vmul.f32 %v992, %v997
        %v1003 = vmul.f32 %v992, %v1001
        %v1004 = vadd.f32 %v988, %v1002
        %v1005 = vadd.f32 %v989, %v1003
        %1006 = vset.pattern.permute.xlu0 13
        %1007 = vperm.xlu0 %1006, %v790
        %v1008 = vpop.permute.xlu0 %1007
        %v1010 = vlaneseq
        %v1011 = vshrl.u32 %v1010, 7
        %v1012 = vsub.s32 5, %v1011
        %v1013 = vrot.slane %v788, %v1012
        %v1014 = vlaneseq
        %v1015 = vshrl.u32 %v1014, 7
        %v1016 = vsub.s32 5, %v1015
        %v1017 = vrot.slane %v789, %v1016
        %v1018 = vmul.f32 %v1008, %v1013
        %v1019 = vmul.f32 %v1008, %v1017
        %v1020 = vadd.f32 %v1004, %v1018
        %v1021 = vadd.f32 %v1005, %v1019
        %1022 = vset.pattern.permute.xlu0 14
        %1023 = vperm.xlu0 %1022, %v790
        %v1024 = vpop.permute.xlu0 %1023
        %v1026 = vlaneseq
        %v1027 = vshrl.u32 %v1026, 7
        %v1028 = vsub.s32 6, %v1027
        %v1029 = vrot.slane %v788, %v1028
        %v1030 = vlaneseq
        %v1031 = vshrl.u32 %v1030, 7
        %v1032 = vsub.s32 6, %v1031
        %v1033 = vrot.slane %v789, %v1032
        %v1034 = vmul.f32 %v1024, %v1029
        %v1035 = vmul.f32 %v1024, %v1033
        %v1036 = vadd.f32 %v1020, %v1034
        %v1037 = vadd.f32 %v1021, %v1035
        %1038 = vset.pattern.permute.xlu0 15
        %1039 = vperm.xlu0 %1038, %v790
        %v1040 = vpop.permute.xlu0 %1039
        %v1042 = vlaneseq
        %v1043 = vshrl.u32 %v1042, 7
        %v1044 = vsub.s32 7, %v1043
        %v1045 = vrot.slane %v788, %v1044
        %v1046 = vlaneseq
        %v1047 = vshrl.u32 %v1046, 7
        %v1048 = vsub.s32 7, %v1047
        %v1049 = vrot.slane %v789, %v1048
        %v1050 = vmul.f32 %v1040, %v1045
        %v1051 = vmul.f32 %v1040, %v1049
        %v1052 = vadd.f32 %v1036, %v1050
        %v1053 = vadd.f32 %v1037, %v1051
        %v1056 = vcombine.low %v1052, %v1053
        %v1058 = vunpack.c.l.s4 1983009808
        %v1059 = vunpack.c.0.s8 %v1058
        %v1060 = vlaneseq
        %v1061 = vshrl.u32 %v1060, 7
        %v1062 = vsub.s32 %v1059, %v1061
        %v1063 = vrot.slane %v1056, %v1062
        %1065 = vst [vmem:[%s272] sm:$0xf] %v1063
        %s1066 = sand.u32 %s181, 1
        %s1067 = scalar_lea.sflag [#allocation3], %s1066
        %s1068 = sand.u32 %s181, 1
        %s1069 = smul.addr %s1068, 4
        %s1070 = scalar_lea.vmem [#allocation2], %s1069
        // Predicated region
        $region49: #{tpu_custom_call.1} parent=47 // pred_check
          %p1071 = pneg %p191
        $region50: #{tpu_custom_call.1} parent=47 // pred_check_branch
          %1073 = sbr.rel (%p1071) target = $region52
        $region51: #{tpu_custom_call.1} parent=47 // pred_region
          %s1074 = smul.u32 2, %s21
          %s1076 = ssub.s32 64, 64
          %1077 = vsyncadd %s1067, %s1076
          %s1078 = smul.addr %s1074, 32
          %s1079 = scalar_lea.hbm %s7, %s1078
          %s1081 = sshll.u32 %s1070, 4
          %s1082 = int_to_ptr.vmem [resolvable:$true] %s1081
          %1084 = dma.vmem_to_hbm [thread:$0]  %s1082, 64, %s1079, %s1067
        $region52: #{tpu_custom_call.1} parent=47 // pred_fallthru
          _
      $region48: #{tpu_custom_call.1} parent=5 // pred_fallthru
        _
      %p1085 = scmp.le.s32.totalorder 2, %s16
      // Predicated region
      $region53: #{tpu_custom_call.1} parent=5 // pred_check
        %p1086 = pneg %p1085
      $region54: #{tpu_custom_call.1} parent=5 // pred_check_branch
        %1088 = sbr.rel (%p1086) target = $region56
      $region55: #{tpu_custom_call.1} parent=5 // pred_region
        %s1089 = ssub.s32 %s16, 2
        // Predicated region
        $region57: #{tpu_custom_call.1} parent=55 // pred_check
          %p1090 = pneg %p197
        $region58: #{tpu_custom_call.1} parent=55 // pred_check_branch
          %1092 = sbr.rel (%p1090) target = $region60
        $region59: #{tpu_custom_call.1} parent=55 // pred_region
          %s1093 = sand.u32 %s182, 1
          %s1094 = scalar_lea.sflag [#allocation3], %s1093
          %s1095 = sand.u32 %s182, 1
          %s1096 = smul.addr %s1095, 4
          %s1097 = scalar_lea.vmem [#allocation2], %s1096
          %1098 = dma.done %s1094, 64
        $region60: #{tpu_custom_call.1} parent=55 // pred_fallthru
          _
      $region56: #{tpu_custom_call.1} parent=5 // pred_fallthru
        _
    $region6: #{tpu_custom_call.1} parent=1 // loop_footer
      %s20 = sadd.s32 1, %s16
    $region7: #{tpu_custom_call.1} parent=1 // loop_footer_branch
      %15 = sbr.rel target = $region3
    $region8: #{tpu_custom_call.1} parent=1 // loop_exit
      _
    %1099 = vsyncpa [#allocation3], 1
    %s1100 = scalar_lea.sflag [#allocation3], 1
    %1101 = vsyncpa %s1100, 1

</llo_original>
